<compile_context>
chip_gen: v5e
topology: v5e:2x2
jax: 0.10.0
libtpu: 0.0.40
codegen_flags: <defaults>
</compile_context>

<pallas_src>
import jax
import jax.numpy as jnp
from jax.experimental import pallas as pl
from jax.experimental.pallas import tpu as pltpu


def fused_affine_kernel(x_ref, w_ref, b_ref, o_ref):
    # x_ref: (6, TB)  in VMEM, native input dtype (feature-major, lane-dense)
    # w_ref: (6, 1)   f32 in VMEM (fused weight column)
    # b_ref: (1,)     f32 in SMEM (fused scalar bias)
    # o_ref: (1, TB)  f32 in VMEM (lane-dense output row)
    x = x_ref[...].astype(jnp.float32)          # mirrors x.float(); VPU cast
    w = w_ref[...]                              # (6, 1), broadcasts over lanes
    # VPU broadcast-multiply + sublane reduce over the 6 feature rows.
    o_ref[...] = jnp.sum(x * w, axis=0, keepdims=True) + b_ref[0]


def _round_up(v, m):
    return ((v + m - 1) // m) * m


def net_forward(x, params):
    w1, b1, w2, b2, w3, b3 = params
    B = x.shape[0]

    # Algebraic fusion of fc1/fc2/fc3 (no nonlinearity between them):
    #   ((x W1 + b1) W2 + b2) W3 + b3  ==  x (W1 W2 W3) + (b1 W2 W3 + b2 W3 + b3)
    f32 = jnp.float32
    w_fused = (w1.astype(f32) @ w2.astype(f32) @ w3.astype(f32))              # (6, 1)
    b_fused = (b1.astype(f32) @ w2.astype(f32) @ w3.astype(f32)
               + b2.astype(f32) @ w3.astype(f32) + b3.astype(f32))            # (1, 1)
    b_vec = b_fused.reshape(1)

    # Feature-major (lane-dense) layout for the kernel: (B, 6) -> (6, B).
    # TODO(synk): ideally the producer hands x over feature-major already; the
    # transpose here is one extra XLA pass over x.
    xT = x.T                                                                  # (6, B)

    # Batch tile: multiple of 128 lanes, capped so double-buffered x+out tiles
    # stay ~8 MiB (well inside default scoped VMEM on v5e/v6e/v7x), and chosen
    # as ~B/2 so the parallel grid axis has >=2 blocks for v7x's 2 TensorCores.
    TB_CAP = 64 * 1024
    if B <= 128:
        TB = B                                  # full-extent lane dim, no masking
    else:
        TB = min(TB_CAP, _round_up(pl.cdiv(B, 2), 128))
    n_blocks = pl.cdiv(B, TB)                   # ragged last block is masked by Pallas

    out = pl.pallas_call(
        fused_affine_kernel,
        out_shape=jax.ShapeDtypeStruct((1, B), jnp.float32),
        grid=(n_blocks,),
        in_specs=[
            pl.BlockSpec((6, TB), lambda i: (0, i)),               # x tile (lane-dense)
            pl.BlockSpec((6, 1), lambda i: (0, 0)),                # fused weight column
            pl.BlockSpec(memory_space=pltpu.MemorySpace.SMEM),     # fused scalar bias
        ],
        out_specs=pl.BlockSpec((1, TB), lambda i: (0, i)),         # lane-dense output row
        compiler_params=pltpu.CompilerParams(
            dimension_semantics=("parallel",)),
    )(xT, w_fused, b_vec)

    return out.reshape(B, 1)


def init_params(key):
    # nn.Linear shapes, stored transposed so the math is x @ W + b:
    #   fc1: W1 (6, 3), b1 (1, 3); fc2: W2 (3, 1), b2 (1, 1); fc3: W3 (1, 1), b3 (1, 1)
    k1, k2, k3, k4, k5, k6 = jax.random.split(key, 6)
    w1 = jax.random.uniform(k1, (6, 3), jnp.float32, -1.0, 1.0)
    b1 = jax.random.uniform(k2, (1, 3), jnp.float32, -1.0, 1.0)
    w2 = jax.random.uniform(k3, (3, 1), jnp.float32, -1.0, 1.0)
    b2 = jax.random.uniform(k4, (1, 1), jnp.float32, -1.0, 1.0)
    w3 = jax.random.uniform(k5, (1, 1), jnp.float32, -1.0, 1.0)
    b3 = jax.random.uniform(k6, (1, 1), jnp.float32, -1.0, 1.0)
    return (w1, b1, w2, b2, w3, b3)


if __name__ == "__main__":
    key = jax.random.PRNGKey(0)
    kx, kx2, kp = jax.random.split(key, 3)
    params = init_params(kp)
    w1, b1, w2, b2, w3, b3 = params

    # Small batch (single sub-128 block).
    B = 8
    x = jax.random.normal(kx, (B, 6), dtype=jnp.float32)
    out = net_forward(x, params)
    jax.block_until_ready(out)
    ref = ((x @ w1 + b1) @ w2 + b2) @ w3 + b3
    assert out.shape == (B, 1)
    assert jnp.allclose(out, ref, atol=1e-4, rtol=1e-4)

    # Slightly larger ragged batch: exercises multi-block grid + masked last block.
    B2 = 300
    x2 = jax.random.normal(kx2, (B2, 6), dtype=jnp.float32)
    out2 = net_forward(x2, params)
    jax.block_until_ready(out2)
    ref2 = ((x2 @ w1 + b1) @ w2 + b2) @ w3 + b3
    assert out2.shape == (B2, 1)
    assert jnp.allclose(out2, ref2, atol=1e-4, rtol=1e-4)

    print("KERNEL_OK")
</pallas_src>

<mosaic_0001>
module attributes {stable_mosaic.version = 11 : i64} {
  func.func @fused_affine_kernel(%arg0: i32, %arg1: memref<6x8xf32, #tpu.memory_space<vmem>>, %arg2: memref<6x1xf32, #tpu.memory_space<vmem>>, %arg3: memref<1xf32, #tpu.memory_space<smem>>, %arg4: memref<1x8xf32, #tpu.memory_space<vmem>>) attributes {dimension_semantics = [#tpu.dimension_semantics<parallel>], iteration_bounds = array<i64: 1>, scalar_prefetch = 0 : i64, scratch_operands = 0 : i64, tpu.core_type = #tpu.core_type<tc>, window_params = [{transform_indices = @transform_0, window_bounds = array<i64: 6, 8>}, {pipeline_mode = #tpu.pipeline_mode<synchronous>, transform_indices = @transform_1, window_bounds = array<i64: 6, 1>}, {transform_indices = @transform_2, window_bounds = array<i64: 1>}, {transform_indices = @transform_3, window_bounds = array<i64: 1, 8>}]} {
    %c0 = arith.constant 0 : index
    %c0_0 = arith.constant 0 : index
    %0 = vector.load %arg1[%c0, %c0_0] : memref<6x8xf32, #tpu.memory_space<vmem>>, vector<6x8xf32>
    %c0_1 = arith.constant 0 : index
    %c0_2 = arith.constant 0 : index
    %1 = vector.load %arg2[%c0_1, %c0_2] : memref<6x1xf32, #tpu.memory_space<vmem>>, vector<6x1xf32>
    %2 = vector.broadcast %1 : vector<6x1xf32> to vector<6x8xf32>
    %3 = arith.mulf %0, %2 : vector<6x8xf32>
    %cst = arith.constant dense<0.000000e+00> : vector<8xf32>
    %4 = vector.multi_reduction <add>, %3, %cst [0] : vector<6x8xf32> to vector<8xf32>
    %5 = vector.shape_cast %4 : vector<8xf32> to vector<1x8xf32>
    %c0_3 = arith.constant 0 : index
    %6 = memref.load %arg3[%c0_3] : memref<1xf32, #tpu.memory_space<smem>>
    %7 = vector.broadcast %6 : f32 to vector<1x8xf32>
    %8 = arith.addf %5, %7 : vector<1x8xf32>
    %c0_4 = arith.constant 0 : index
    %c0_5 = arith.constant 0 : index
    %9 = vector.load %arg4[%c0_4, %c0_5] : memref<1x8xf32, #tpu.memory_space<vmem>>, vector<1x8xf32>
    tpu.vector_store %arg4[%c0_4, %c0_5], %8 {strides = array<i32>} : memref<1x8xf32, #tpu.memory_space<vmem>>, vector<1x8xf32>,
    return
  }
  func.func @transform_0(%arg0: i32) -> (i32, i32) {
    %c0_i32 = arith.constant 0 : i32
    %c0_i32_0 = arith.constant 0 : i32
    return %c0_i32, %arg0 : i32, i32
  }
  func.func @transform_1(%arg0: i32) -> (i32, i32) {
    %c0_i32 = arith.constant 0 : i32
    %c0_i32_0 = arith.constant 0 : i32
    %c0_i32_1 = arith.constant 0 : i32
    return %c0_i32, %c0_i32_0 : i32, i32
  }
  func.func @transform_2(%arg0: i32) -> i32 {
    %c0_i32 = arith.constant 0 : i32
    %c0_i32_0 = arith.constant 0 : i32
    return %c0_i32 : i32
  }
  func.func @transform_3(%arg0: i32) -> (i32, i32) {
    %c0_i32 = arith.constant 0 : i32
    %c0_i32_0 = arith.constant 0 : i32
    return %c0_i32, %arg0 : i32, i32
  }
}

</mosaic_0001>

<llo_original>
// kernel: tpu_custom_call.1
$region0: #{tpu_custom_call.1}
  #allocation0 [shape = 'u32[]', space=smem, size = 0x4, offset = 0x4, fixed_abs, tag = 'smem constant byte address 0x4 - core index']
  #allocation1 [shape = 'u32[72,128]{1,0:T(1,128)}', space=vmem, size = 0x9000, scoped, tag = 'internal scratch']
  #allocation2 [shape = 'f32[1]{0:T(128)S(6)}', space=smem, size = 0x200, scoped, tag = 'scoped memory for tpu_custom_call.1']
  %s0 = inlined_call_operand.vmem [shape: f32[6,8], index: 0, kind: input, shape index: {}]
  %s1 = inlined_call_operand.vmem [shape: f32[6,1], index: 1, kind: input, shape index: {}]
  %s2 = inlined_call_operand.<no memory space> [shape: f32[1], index: 2, kind: input, shape index: {}]
  %s3 = inlined_call_operand.hbm [shape: f32[1,8], index: 3, kind: output, shape index: {}]
  %s4 = sld [smem:[#allocation0]]
  $region22: #{tpu_custom_call.1} parent=0
    _
  %s6 = ssub.s32 1, %s4
  %s7 = scalar_select 0, %s6, %s4
  %8 = sst [smem:[#allocation2]] %s2
  $region1: #{tpu_custom_call.1} parent=0
    #allocation3 [shape = 'u8[512]{0}', space=vmem, size = 0x400, scoped, tag = 'output window, operand 0, single buffered']
    #allocation4 [shape = 's32[1]{0}', space=sflag, size = 0x4, scoped, tag = 'scoped memory for tpu_custom_call.1']
    %9 = vsyncpa [#allocation4], 0
    // Predicated region
    $region2: #{tpu_custom_call.1} parent=1 // pred_check
      _
    $region3: #{tpu_custom_call.1} parent=1 // pred_check_branch
      %11 = sbr.rel (0) target = $region5
    $region4: #{tpu_custom_call.1} parent=1 // pred_region
      _
    $region5: #{tpu_custom_call.1} parent=1 // pred_fallthru
      _
    // Predicated region
    $region6: #{tpu_custom_call.1} parent=1 // pred_check
      _
    $region7: #{tpu_custom_call.1} parent=1 // pred_check_branch
      %13 = sbr.rel (0) target = $region9
    $region8: #{tpu_custom_call.1} parent=1 // pred_region
      _
    $region9: #{tpu_custom_call.1} parent=1 // pred_fallthru
      _
    // Predicated region
    $region10: #{tpu_custom_call.1} parent=1 // pred_check
      _
    $region11: #{tpu_custom_call.1} parent=1 // pred_check_branch
      %15 = sbr.rel (0) target = $region13
    $region12: #{tpu_custom_call.1} parent=1 // pred_region
      _
    $region13: #{tpu_custom_call.1} parent=1 // pred_fallthru
      _
    %v16 = vld [vmem:[%s0] sm:$0x3f]
    %v17 = vld [vmem:[%s1] sm:$0x3f]
    %19 = vset.pattern.permute.xlu0 0
    %20 = vperm.xlu0 %19, %v17
    %v21 = vpop.permute.xlu0 %20
    %v23 = vmul.f32 %v16, %v21
    %vm24 = vcmask 62464
    %v25 = vsel %vm24, %v23, 0.0
    %v26 = vrot.slane %v25, 4
    %v27 = vadd.f32 %v25, %v26
    %v28 = vrot.slane %v27, 2
    %v29 = vadd.f32 %v27, %v28
    %v30 = vrot.slane %v29, 1
    %v31 = vadd.f32 %v29, %v30
    %s32 = sld [smem:[#allocation2]]
    %v33 = vstv %s32
    %v34 = vadd.f32 %v31, %v33
    %vm35 = vcmask 57344
    %36 = vst.msk [vmem:[#allocation3] sm:$0x1] %vm35, %v34
    // Predicated region
    $region14: #{tpu_custom_call.1} parent=1 // pred_check
      _
    $region15: #{tpu_custom_call.1} parent=1 // pred_check_branch
      %38 = sbr.rel (0) target = $region17
    $region16: #{tpu_custom_call.1} parent=1 // pred_region
      %40 = vsyncadd [#allocation4], 0
      %s42 = sshll.u32 [#allocation3], 4
      %s43 = int_to_ptr.vmem [resolvable:$true] %s42
      %s44 = sshll.u32 %s3, 4
      %s45 = int_to_ptr.hbm [resolvable:$true] %s44
      %47 = dma.vmem_to_hbm [thread:$0]  %s43, 16, %s45, [#allocation4]
    $region17: #{tpu_custom_call.1} parent=1 // pred_fallthru
      _
    // Predicated region
    $region18: #{tpu_custom_call.1} parent=1 // pred_check
      _
    $region19: #{tpu_custom_call.1} parent=1 // pred_check_branch
      %49 = sbr.rel (0) target = $region21
    $region20: #{tpu_custom_call.1} parent=1 // pred_region
      %51 = dma.done [#allocation4], 16
    $region21: #{tpu_custom_call.1} parent=1 // pred_fallthru
      _
    %52 = vsyncpa [#allocation4], 1

</llo_original>
